<compile_context>
chip_gen: v7x
topology: tpu7x:2x2x1
jax: 0.10.0
libtpu: 0.0.40
codegen_flags: <defaults>
</compile_context>

<pallas_src>
import functools

import jax
import jax.numpy as jnp
from jax import lax
from jax.experimental import pallas as pl
from jax.experimental.pallas import tpu as pltpu


def _round_up(x, m):
    return ((x + m - 1) // m) * m


def _focal_dice_kernel(alpha_ref, pred_ref, tgt_ref, out_ref, *, gamma, hw, onehot_target):
    # alpha_ref : (C, 1) f32      pred_ref / tgt_ref : (C, TILE_P) native dtype
    # out_ref   : (8, 128) f32    rows 0..3 accumulate [focal_sum, inter, a_sum, b_sum]
    p_id = pl.program_id(1)

    @pl.when(p_id == 0)
    def _():
        out_ref[...] = jnp.zeros_like(out_ref)

    pred = pred_ref[...].astype(jnp.float32)             # (C, T)
    tgt = tgt_ref[...].astype(jnp.float32)                # (C, T)
    alpha = alpha_ref[...].astype(jnp.float32)            # (C, 1)
    C, T = pred.shape

    # ---- softmax pieces along the channel (sublane) axis ----
    m = jnp.max(pred, axis=0, keepdims=True)              # (1, T)
    shifted = pred - m
    e = jnp.exp(shifted)                                   # (C, T)
    se = jnp.sum(e, axis=0, keepdims=True)                 # (1, T)
    rse = pl.reciprocal(se, approx=False)                  # exact 1/sum(e)
    log_se = jnp.log(se)

    # ---- selected (target-class) logit and alpha weight ----
    if onehot_target:
        sel_shift = jnp.sum(tgt * shifted, axis=0, keepdims=True)    # (1, T)
        alpha_t = jnp.sum(tgt * alpha, axis=0, keepdims=True)        # (1, T)
    else:
        # torch.argmax(target, dim=1) as a one-hot select (first max wins).
        iota_c = lax.broadcasted_iota(jnp.int32, (C, T), 0)
        tmax = jnp.max(tgt, axis=0, keepdims=True)
        idx = jnp.min(jnp.where(tgt == tmax, iota_c, C), axis=0, keepdims=True)
        sel = iota_c == idx                                            # (C, T)
        sel_shift = jnp.sum(jnp.where(sel, shifted, 0.0), axis=0, keepdims=True)
        alpha_t = jnp.sum(jnp.where(sel, alpha, 0.0), axis=0, keepdims=True)

    # ---- weighted CE + focal loss (per pixel) ----
    ce = alpha_t * (log_se - sel_shift)                    # = -alpha[y] * log_softmax[y]
    pt = jnp.exp(-ce)
    one_minus_pt = 1.0 - pt
    if float(gamma).is_integer():
        fw = lax.integer_pow(one_minus_pt, int(gamma))
    else:
        fw = jnp.power(one_minus_pt, jnp.float32(gamma))
    focal_pix = fw * ce                                    # (1, T)

    # ---- dice per-pixel partials over foreground channels (1:), no probs slab ----
    a_pix = 1.0 - e[0:1, :] * rse                          # sum_{c>=1} softmax[c]
    et = e * tgt
    inter_pix = (jnp.sum(et, axis=0, keepdims=True) - et[0:1, :]) * rse
    b_pix = jnp.sum(tgt, axis=0, keepdims=True) - tgt[0:1, :]

    # ---- valid-pixel mask (only when the last tile overhangs H*W) ----
    if hw % T != 0:
        lane = lax.broadcasted_iota(jnp.int32, (1, T), 1)
        valid = (p_id * T + lane) < hw                     # (1, T)
        zero = jnp.zeros_like(focal_pix)
        focal_pix = jnp.where(valid, focal_pix, zero)
        a_pix = jnp.where(valid, a_pix, zero)
        inter_pix = jnp.where(valid, inter_pix, zero)
        b_pix = jnp.where(valid, b_pix, zero)

    focal_s = jnp.sum(focal_pix)
    inter_s = jnp.sum(inter_pix)
    a_s = jnp.sum(a_pix)
    b_s = jnp.sum(b_pix)

    # ---- accumulate the four tile partials into rows 0..3 of the resident block ----
    row = lax.broadcasted_iota(jnp.int32, out_ref.shape, 0)
    upd = jnp.where(row == 0, focal_s,
          jnp.where(row == 1, inter_s,
          jnp.where(row == 2, a_s,
          jnp.where(row == 3, b_s, 0.0))))
    out_ref[...] += upd


def focal_dice_loss(pred, target, alpha, gamma=2.0, smooth=1e-5, *,
                    tile_p=16384, assume_onehot_target=False):
    """pred, target: (N, C, H, W). Returns scalar float32 loss (FocalLoss + DiceLossTest)."""
    N, C, H, W = pred.shape
    HW = H * W
    P = N * HW

    # Free reshapes only -- no transpose and no separate cast pass in HBM.
    pred3 = pred.reshape(N, C, HW)
    tgt3 = target.reshape(N, C, HW)
    alpha_arr = jnp.asarray(alpha, jnp.float32).reshape(C, 1)

    tile = min(int(tile_p), _round_up(HW, 128))
    tile = _round_up(tile, 128)
    grid = (N, pl.cdiv(HW, tile))

    kernel = functools.partial(
        _focal_dice_kernel,
        gamma=float(gamma), hw=HW, onehot_target=bool(assume_onehot_target))

    partials = pl.pallas_call(
        kernel,
        out_shape=jax.ShapeDtypeStruct((N, 8, 128), jnp.float32),
        grid=grid,
        in_specs=[
            pl.BlockSpec((C, 1), lambda n, p: (0, 0)),                # alpha (resident)
            pl.BlockSpec((None, C, tile), lambda n, p: (n, 0, p)),    # pred tile
            pl.BlockSpec((None, C, tile), lambda n, p: (n, 0, p)),    # target tile
        ],
        out_specs=pl.BlockSpec((None, 8, 128), lambda n, p: (n, 0, 0)),
        compiler_params=pltpu.CompilerParams(
            dimension_semantics=("parallel", "arbitrary"),
            vmem_limit_bytes=32 * 1024 * 1024,
        ),
    )(alpha_arr, pred3, tgt3)

    # Tiny scalar epilogue in the wrapper (reduces per-batch partials).
    sums = jnp.sum(partials[:, :4, 0], axis=0)             # [focal_sum, inter, a_sum, b_sum]
    focal_mean = sums[0] / jnp.float32(P)
    inter, a_s, b_s = sums[1], sums[2], sums[3]
    union = a_s + b_s
    score = jnp.where(union == 0.0, jnp.float32(1.0),
                      (2.0 * inter + jnp.float32(smooth)) / (union + jnp.float32(smooth)))
    return focal_mean + (1.0 - score)


def _reference(pred, target, alpha, gamma=2.0, smooth=1e-5):
    """Pure-JAX reference mirroring the PyTorch module."""
    pred = pred.astype(jnp.float32)
    target = target.astype(jnp.float32)
    logp = jax.nn.log_softmax(pred, axis=1)
    probs = jnp.exp(logp)
    idx = jnp.argmax(target, axis=1)
    alpha_arr = jnp.asarray(alpha, jnp.float32)
    onehot = jax.nn.one_hot(idx, pred.shape[1], axis=1, dtype=jnp.float32)
    logp_t = jnp.sum(onehot * logp, axis=1)
    ce = -alpha_arr[idx] * logp_t
    pt = jnp.exp(-ce)
    focal = ((1.0 - pt) ** gamma * ce).mean()
    a = probs[:, 1:].reshape(-1)
    b = target[:, 1:].reshape(-1)
    inter = jnp.sum(a * b)
    union = jnp.sum(a) + jnp.sum(b)
    score = jnp.where(union == 0.0, 1.0, (2.0 * inter + smooth) / (union + smooth))
    return focal + (1.0 - score)


if __name__ == "__main__":
    key = jax.random.PRNGKey(0)
    k1, k2, k3, k4 = jax.random.split(key, 4)

    alpha = [0.25, 0.8, 0.8, 0.8]     # FocalLoss default -> C = 4
    gamma = 2.0

    # Case 1: one-hot targets (N=2, C=4, H=W=16).
    N, C, H, W = 2, 4, 16, 16
    pred = jax.random.normal(k1, (N, C, H, W), dtype=jnp.float32)
    cls = jax.random.randint(k2, (N, H, W), 0, C)
    target = jax.nn.one_hot(cls, C, axis=1, dtype=jnp.float32)

    loss = jax.block_until_ready(focal_dice_loss(pred, target, alpha, gamma))
    ref = jax.block_until_ready(_reference(pred, target, alpha, gamma))
    assert abs(float(loss) - float(ref)) < 1e-4, (float(loss), float(ref))

    # One-hot fast path must agree as well.
    loss_oh = jax.block_until_ready(
        focal_dice_loss(pred, target, alpha, gamma, assume_onehot_target=True))
    assert abs(float(loss_oh) - float(ref)) < 1e-4, (float(loss_oh), float(ref))

    # Case 2: non-one-hot targets + small tile -> multi-tile grid with tail masking.
    H2, W2 = 13, 11
    pred2 = jax.random.normal(k3, (N, C, H2, W2), dtype=jnp.float32)
    target2 = jax.random.normal(k4, (N, C, H2, W2), dtype=jnp.float32)
    loss2 = jax.block_until_ready(
        focal_dice_loss(pred2, target2, alpha, gamma, tile_p=128))
    ref2 = jax.block_until_ready(_reference(pred2, target2, alpha, gamma))
    assert abs(float(loss2) - float(ref2)) < 1e-4, (float(loss2), float(ref2))

    print("KERNEL_OK")
</pallas_src>

<mosaic_0001>
module attributes {stable_mosaic.version = 11 : i64} {
  func.func @_focal_dice_kernel(%arg0: i32, %arg1: i32, %arg2: memref<4x1xf32, #tpu.memory_space<vmem>>, %arg3: memref<1x4x256xf32, #tpu.memory_space<vmem>>, %arg4: memref<1x4x256xf32, #tpu.memory_space<vmem>>, %arg5: memref<1x8x128xf32, #tpu.memory_space<vmem>>) attributes {dimension_semantics = [#tpu.dimension_semantics<parallel>, #tpu.dimension_semantics<arbitrary>], iteration_bounds = array<i64: 2, 1>, scalar_prefetch = 0 : i64, scratch_operands = 0 : i64, tpu.core_type = #tpu.core_type<tc>, window_params = [{pipeline_mode = #tpu.pipeline_mode<synchronous>, transform_indices = @transform_0, window_bounds = array<i64: 4, 1>}, {transform_indices = @transform_1, window_bounds = array<i64: 1, 4, 256>}, {transform_indices = @transform_2, window_bounds = array<i64: 1, 4, 256>}, {transform_indices = @transform_3, window_bounds = array<i64: 1, 8, 128>}]} {
    %c0_i32 = arith.constant 0 : i32
    %0 = arith.cmpi eq, %arg1, %c0_i32 : i32
    %1 = arith.extui %0 : i1 to i32
    %c0_i32_0 = arith.constant 0 : i32
    %2 = arith.cmpi ne, %1, %c0_i32_0 : i32
    scf.if %2 {
      %cst_32 = arith.constant 0.000000e+00 : f32
      %101 = vector.broadcast %cst_32 : f32 to vector<8x128xf32>
      %c0_33 = arith.constant 0 : index
      %c0_34 = arith.constant 0 : index
      %c0_35 = arith.constant 0 : index
      %102 = vector.load %arg5[%c0_33, %c0_34, %c0_35] : memref<1x8x128xf32, #tpu.memory_space<vmem>>, vector<1x8x128xf32>
      %103 = vector.shape_cast %102 : vector<1x8x128xf32> to vector<8x128xf32>
      %104 = vector.shape_cast %101 : vector<8x128xf32> to vector<1x8x128xf32>
      tpu.vector_store %arg5[%c0_33, %c0_34, %c0_35], %104 {strides = array<i32>} : memref<1x8x128xf32, #tpu.memory_space<vmem>>, vector<1x8x128xf32>,
    } else {
    }
    %c0 = arith.constant 0 : index
    %c0_1 = arith.constant 0 : index
    %c0_2 = arith.constant 0 : index
    %3 = vector.load %arg3[%c0, %c0_1, %c0_2] : memref<1x4x256xf32, #tpu.memory_space<vmem>>, vector<1x4x256xf32>
    %4 = vector.shape_cast %3 : vector<1x4x256xf32> to vector<4x256xf32>
    %c0_3 = arith.constant 0 : index
    %c0_4 = arith.constant 0 : index
    %c0_5 = arith.constant 0 : index
    %5 = vector.load %arg4[%c0_3, %c0_4, %c0_5] : memref<1x4x256xf32, #tpu.memory_space<vmem>>, vector<1x4x256xf32>
    %6 = vector.shape_cast %5 : vector<1x4x256xf32> to vector<4x256xf32>
    %c0_6 = arith.constant 0 : index
    %c0_7 = arith.constant 0 : index
    %7 = vector.load %arg2[%c0_6, %c0_7] : memref<4x1xf32, #tpu.memory_space<vmem>>, vector<4x1xf32>
    %cst = arith.constant dense<0xFF800000> : vector<256xf32>
    %8 = vector.multi_reduction <maximumf>, %4, %cst [0] : vector<4x256xf32> to vector<256xf32>
    %9 = vector.shape_cast %8 : vector<256xf32> to vector<1x256xf32>
    %10 = vector.broadcast %9 : vector<1x256xf32> to vector<4x256xf32>
    %11 = arith.subf %4, %10 : vector<4x256xf32>
    %12 = math.exp %11 : vector<4x256xf32>
    %cst_8 = arith.constant dense<0.000000e+00> : vector<256xf32>
    %13 = vector.multi_reduction <add>, %12, %cst_8 [0] : vector<4x256xf32> to vector<256xf32>
    %14 = vector.shape_cast %13 : vector<256xf32> to vector<1x256xf32>
    %15 = tpu.reciprocal %14 : vector<1x256xf32> -> vector<1x256xf32>
    %16 = math.log %14 : vector<1x256xf32>
    %17 = tpu.iota {dimensions = array<i32: 0>} : vector<4x256xi32>
    %cst_9 = arith.constant dense<0xFF800000> : vector<256xf32>
    %18 = vector.multi_reduction <maximumf>, %6, %cst_9 [0] : vector<4x256xf32> to vector<256xf32>
    %19 = vector.shape_cast %18 : vector<256xf32> to vector<1x256xf32>
    %20 = vector.broadcast %19 : vector<1x256xf32> to vector<4x256xf32>
    %21 = arith.cmpf oeq, %6, %20 : vector<4x256xf32>
    %c4_i32 = arith.constant 4 : i32
    %22 = vector.broadcast %c4_i32 : i32 to vector<4x256xi32>
    %23 = arith.select %21, %17, %22 : vector<4x256xi1>, vector<4x256xi32>
    %cst_10 = arith.constant dense<2147483647> : vector<256xi32>
    %24 = vector.multi_reduction <minsi>, %23, %cst_10 [0] : vector<4x256xi32> to vector<256xi32>
    %25 = vector.shape_cast %24 : vector<256xi32> to vector<1x256xi32>
    %26 = vector.broadcast %25 : vector<1x256xi32> to vector<4x256xi32>
    %27 = arith.cmpi eq, %17, %26 : vector<4x256xi32>
    %cst_11 = arith.constant 0.000000e+00 : f32
    %28 = vector.broadcast %cst_11 : f32 to vector<4x256xf32>
    %29 = arith.select %27, %11, %28 : vector<4x256xi1>, vector<4x256xf32>
    %cst_12 = arith.constant dense<0.000000e+00> : vector<256xf32>
    %30 = vector.multi_reduction <add>, %29, %cst_12 [0] : vector<4x256xf32> to vector<256xf32>
    %31 = vector.shape_cast %30 : vector<256xf32> to vector<1x256xf32>
    %cst_13 = arith.constant 0.000000e+00 : f32
    %32 = vector.shape_cast %7 : vector<4x1xf32> to vector<4x1xf32>
    %33 = vector.broadcast %32 : vector<4x1xf32> to vector<4x256xf32>
    %34 = vector.broadcast %cst_13 : f32 to vector<4x256xf32>
    %35 = arith.select %27, %33, %34 : vector<4x256xi1>, vector<4x256xf32>
    %cst_14 = arith.constant dense<0.000000e+00> : vector<256xf32>
    %36 = vector.multi_reduction <add>, %35, %cst_14 [0] : vector<4x256xf32> to vector<256xf32>
    %37 = vector.shape_cast %36 : vector<256xf32> to vector<1x256xf32>
    %38 = arith.subf %16, %31 : vector<1x256xf32>
    %39 = arith.mulf %37, %38 : vector<1x256xf32>
    %cst_15 = arith.constant 0.000000e+00 : f32
    %40 = vector.broadcast %cst_15 : f32 to vector<1x256xf32>
    %41 = arith.subf %40, %39 : vector<1x256xf32>
    %42 = math.exp %41 : vector<1x256xf32>
    %cst_16 = arith.constant 1.000000e+00 : f32
    %43 = vector.broadcast %cst_16 : f32 to vector<1x256xf32>
    %44 = arith.subf %43, %42 : vector<1x256xf32>
    %45 = arith.mulf %44, %44 : vector<1x256xf32>
    %46 = arith.mulf %45, %39 : vector<1x256xf32>
    %47 = vector.extract_strided_slice %12 {offsets = [0, 0], sizes = [1, 256], strides = [1, 1]} : vector<4x256xf32> to vector<1x256xf32>
    %48 = arith.mulf %47, %15 : vector<1x256xf32>
    %cst_17 = arith.constant 1.000000e+00 : f32
    %49 = vector.broadcast %cst_17 : f32 to vector<1x256xf32>
    %50 = arith.subf %49, %48 : vector<1x256xf32>
    %51 = arith.mulf %12, %6 : vector<4x256xf32>
    %cst_18 = arith.constant dense<0.000000e+00> : vector<256xf32>
    %52 = vector.multi_reduction <add>, %51, %cst_18 [0] : vector<4x256xf32> to vector<256xf32>
    %53 = vector.shape_cast %52 : vector<256xf32> to vector<1x256xf32>
    %54 = vector.extract_strided_slice %51 {offsets = [0, 0], sizes = [1, 256], strides = [1, 1]} : vector<4x256xf32> to vector<1x256xf32>
    %55 = arith.subf %53, %54 : vector<1x256xf32>
    %56 = arith.mulf %55, %15 : vector<1x256xf32>
    %cst_19 = arith.constant dense<0.000000e+00> : vector<256xf32>
    %57 = vector.multi_reduction <add>, %6, %cst_19 [0] : vector<4x256xf32> to vector<256xf32>
    %58 = vector.shape_cast %57 : vector<256xf32> to vector<1x256xf32>
    %59 = vector.extract_strided_slice %6 {offsets = [0, 0], sizes = [1, 256], strides = [1, 1]} : vector<4x256xf32> to vector<1x256xf32>
    %60 = arith.subf %58, %59 : vector<1x256xf32>
    %61 = vector.shape_cast %46 : vector<1x256xf32> to vector<1x1x256xf32>
    %cst_20 = arith.constant dense<0.000000e+00> : vector<1xf32>
    %62 = vector.multi_reduction <add>, %61, %cst_20 [1, 2] : vector<1x1x256xf32> to vector<1xf32>
    %63 = vector.shape_cast %62 : vector<1xf32> to vector<1x1x1xf32>
    %64 = vector.extract %63[0, 0, 0] : f32 from vector<1x1x1xf32>
    %65 = vector.shape_cast %56 : vector<1x256xf32> to vector<1x1x256xf32>
    %cst_21 = arith.constant dense<0.000000e+00> : vector<1xf32>
    %66 = vector.multi_reduction <add>, %65, %cst_21 [1, 2] : vector<1x1x256xf32> to vector<1xf32>
    %67 = vector.shape_cast %66 : vector<1xf32> to vector<1x1x1xf32>
    %68 = vector.extract %67[0, 0, 0] : f32 from vector<1x1x1xf32>
    %69 = vector.shape_cast %50 : vector<1x256xf32> to vector<1x1x256xf32>
    %cst_22 = arith.constant dense<0.000000e+00> : vector<1xf32>
    %70 = vector.multi_reduction <add>, %69, %cst_22 [1, 2] : vector<1x1x256xf32> to vector<1xf32>
    %71 = vector.shape_cast %70 : vector<1xf32> to vector<1x1x1xf32>
    %72 = vector.extract %71[0, 0, 0] : f32 from vector<1x1x1xf32>
    %73 = vector.shape_cast %60 : vector<1x256xf32> to vector<1x1x256xf32>
    %cst_23 = arith.constant dense<0.000000e+00> : vector<1xf32>
    %74 = vector.multi_reduction <add>, %73, %cst_23 [1, 2] : vector<1x1x256xf32> to vector<1xf32>
    %75 = vector.shape_cast %74 : vector<1xf32> to vector<1x1x1xf32>
    %76 = vector.extract %75[0, 0, 0] : f32 from vector<1x1x1xf32>
    %77 = tpu.iota {dimensions = array<i32: 0>} : vector<8x128xi32>
    %c0_i32_24 = arith.constant 0 : i32
    %78 = vector.broadcast %c0_i32_24 : i32 to vector<8x128xi32>
    %79 = arith.cmpi eq, %77, %78 : vector<8x128xi32>
    %c1_i32 = arith.constant 1 : i32
    %80 = vector.broadcast %c1_i32 : i32 to vector<8x128xi32>
    %81 = arith.cmpi eq, %77, %80 : vector<8x128xi32>
    %c2_i32 = arith.constant 2 : i32
    %82 = vector.broadcast %c2_i32 : i32 to vector<8x128xi32>
    %83 = arith.cmpi eq, %77, %82 : vector<8x128xi32>
    %c3_i32 = arith.constant 3 : i32
    %84 = vector.broadcast %c3_i32 : i32 to vector<8x128xi32>
    %85 = arith.cmpi eq, %77, %84 : vector<8x128xi32>
    %cst_25 = arith.constant 0.000000e+00 : f32
    %86 = vector.broadcast %76 : f32 to vector<8x128xf32>
    %87 = vector.broadcast %cst_25 : f32 to vector<8x128xf32>
    %88 = arith.select %85, %86, %87 : vector<8x128xi1>, vector<8x128xf32>
    %89 = vector.broadcast %72 : f32 to vector<8x128xf32>
    %90 = arith.select %83, %89, %88 : vector<8x128xi1>, vector<8x128xf32>
    %91 = vector.broadcast %68 : f32 to vector<8x128xf32>
    %92 = arith.select %81, %91, %90 : vector<8x128xi1>, vector<8x128xf32>
    %93 = vector.broadcast %64 : f32 to vector<8x128xf32>
    %94 = arith.select %79, %93, %92 : vector<8x128xi1>, vector<8x128xf32>
    %c0_26 = arith.constant 0 : index
    %c0_27 = arith.constant 0 : index
    %c0_28 = arith.constant 0 : index
    %95 = vector.load %arg5[%c0_26, %c0_27, %c0_28] : memref<1x8x128xf32, #tpu.memory_space<vmem>>, vector<1x8x128xf32>
    %96 = vector.shape_cast %95 : vector<1x8x128xf32> to vector<8x128xf32>
    %97 = arith.addf %96, %94 : vector<8x128xf32>
    %c0_29 = arith.constant 0 : index
    %c0_30 = arith.constant 0 : index
    %c0_31 = arith.constant 0 : index
    %98 = vector.load %arg5[%c0_29, %c0_30, %c0_31] : memref<1x8x128xf32, #tpu.memory_space<vmem>>, vector<1x8x128xf32>
    %99 = vector.shape_cast %98 : vector<1x8x128xf32> to vector<8x128xf32>
    %100 = vector.shape_cast %97 : vector<8x128xf32> to vector<1x8x128xf32>
    tpu.vector_store %arg5[%c0_29, %c0_30, %c0_31], %100 {strides = array<i32>} : memref<1x8x128xf32, #tpu.memory_space<vmem>>, vector<1x8x128xf32>,
    return
  }
  func.func @transform_0(%arg0: i32, %arg1: i32) -> (i32, i32) {
    %c0_i32 = arith.constant 0 : i32
    %c0_i32_0 = arith.constant 0 : i32
    %c0_i32_1 = arith.constant 0 : i32
    return %c0_i32, %c0_i32_0 : i32, i32
  }
  func.func @transform_1(%arg0: i32, %arg1: i32) -> (i32, i32, i32) {
    %c0_i32 = arith.constant 0 : i32
    %c0_i32_0 = arith.constant 0 : i32
    return %arg0, %c0_i32, %arg1 : i32, i32, i32
  }
  func.func @transform_2(%arg0: i32, %arg1: i32) -> (i32, i32, i32) {
    %c0_i32 = arith.constant 0 : i32
    %c0_i32_0 = arith.constant 0 : i32
    return %arg0, %c0_i32, %arg1 : i32, i32, i32
  }
  func.func @transform_3(%arg0: i32, %arg1: i32) -> (i32, i32, i32) {
    %c0_i32 = arith.constant 0 : i32
    %c0_i32_0 = arith.constant 0 : i32
    %c0_i32_1 = arith.constant 0 : i32
    return %arg0, %c0_i32, %c0_i32_0 : i32, i32, i32
  }
}

</mosaic_0001>

<llo_original>
// kernel: tpu_custom_call.1
$region0: #{tpu_custom_call.1}
  #allocation0 [shape = 'u32[]', space=smem, size = 0x4, offset = 0x4, fixed_abs, tag = 'smem constant byte address 0x4 - core index']
  #allocation1 [shape = 'u32[144,128]{1,0:T(1,128)}', space=vmem, size = 0x12000, scoped, tag = 'internal scratch']
  %s0 = inlined_call_operand.vmem [shape: f32[4,1], index: 0, kind: input, shape index: {}]
  %s1 = inlined_call_operand.hbm [shape: f32[2,4,256], index: 1, kind: input, shape index: {}]
  %s2 = inlined_call_operand.hbm [shape: f32[2,4,256], index: 2, kind: input, shape index: {}]
  %s3 = inlined_call_operand.hbm [shape: f32[2,8,128], index: 3, kind: output, shape index: {}]
  %s4 = sld [smem:[#allocation0]]
  $region57: #{tpu_custom_call.1} parent=0
    _
  %s6 = ssub.s32 1, %s4
  %s7 = scalar_select 0, %s6, %s4
  $region1: #{tpu_custom_call.1} parent=0
    #allocation2 [shape = 'u8[8192]{0}', space=vmem, size = 0x2000, scoped, tag = 'input window, operand 1']
    #allocation3 [shape = 's32[2]{0}', space=sflag, size = 0x8, scoped, tag = 'scoped memory for tpu_custom_call.1']
    #allocation4 [shape = 's32[2]{0}', space=sflag, size = 0x8, scoped, tag = 'scoped memory for tpu_custom_call.1']
    #allocation5 [shape = 'u8[8192]{0}', space=vmem, size = 0x2000, scoped, tag = 'input window, operand 2']
    #allocation6 [shape = 's32[2]{0}', space=sflag, size = 0x8, scoped, tag = 'scoped memory for tpu_custom_call.1']
    #allocation7 [shape = 'u8[8192]{0}', space=vmem, size = 0x2000, scoped, tag = 'output window, operand 0']
    %8 = vsyncpa [#allocation3], 0
    %s9 = scalar_lea.sflag [#allocation3], 1
    %10 = vsyncpa %s9, 0
    %11 = vsyncpa [#allocation6], 0
    %s12 = scalar_lea.sflag [#allocation6], 1
    %13 = vsyncpa %s12, 0
    %14 = vsyncpa [#allocation4], 0
    %s15 = scalar_lea.sflag [#allocation4], 1
    %16 = vsyncpa %s15, 0
    loop: start=0, step=1, limit=4
    $region2: #{tpu_custom_call.1} parent=1 // loop_pre_header
      _
    $region3: #{tpu_custom_call.1} parent=1 // loop_header
      %s18 = sphi 0, %s22
      %p19 = scmp.ge.s32.totalorder %s18, 4
      %s25 = sphi 0, %s37
      %s26 = sphi 0, %s33
      %s27 = sphi 0, %s25
      %s28 = sphi 0, %s26
      %s29 = sphi 0, %s27
      %s30 = sphi 0, %s28
      %s38 = sphi 0, %s38
      %s40 = sphi 0, %s38
      %s41 = sphi 0, %s40
      %s55 = sphi 0, %s41
      %s63 = sphi 0, %s65
      %s66 = sphi 0, %s63
      %s67 = sphi 0, %s66
      %s83 = sphi 0, %s67
      %s91 = sphi 0, %s93
      %s94 = sphi 0, %s91
      %s95 = sphi 0, %s94
      %s111 = sphi 0, %s95
      %s117 = sphi 0, %s119
      %s120 = sphi 0, %s117
      %s121 = sphi 0, %s120
      %s137 = sphi 0, %s121
    $region4: #{tpu_custom_call.1} parent=1 // loop_header_branch
      %21 = sbr.rel (%p19) target = $region8
    $region5: #{tpu_custom_call.1} parent=1 // loop_body
      %s23 = ssub.s32 %s18, 1
      %s24 = ssub.s32 %s18, 2
      %s31 = sadd.s32 1, %s26
      %p32 = scmp.ge.s32.totalorder %s31, 1
      %s33 = scalar_select %p32, 0, %s31
      %s34 = sadd.s32 1, %s25
      %s35 = scalar_select %p32, %s34, %s25
      %p36 = scmp.ge.s32.totalorder %s35, 2
      %s37 = scalar_select %p36, 0, %s35
      %s39 = sadd.s32 %s38, 1
      %p42 = scmp.eq.s32.totalorder %s18, 1
      %p43 = scmp.ne.s32.totalorder %s38, %s40
      %p44 = scmp.eq.s32.totalorder %s18, 0
      %p45 = por %p43, %p44
      %p46 = scmp.ne.s32.totalorder %s38, %s40
      %p47 = scmp.eq.s32.totalorder %s23, 1
      %p48 = por %p46, %p47
      %p49 = scmp.ne.s32.totalorder %s40, %s41
      %p50 = scmp.eq.s32.totalorder %s23, 0
      %p51 = por %p49, %p50
      %p52 = scmp.ne.s32.totalorder %s40, %s41
      %p53 = scmp.eq.s32.totalorder %s24, 1
      %p54 = por %p52, %p53
      %p56 = scmp.ne.s32.totalorder %s41, %s55
      %p57 = scmp.eq.s32.totalorder %s24, 0
      %p58 = por %p56, %p57
      %s59 = ssub.s32 %s25, %s37
      %s60 = ssub.s32 %s26, %s33
      %s61 = sor.u32 %s59, %s60
      %p62 = scmp.eq.s32.totalorder %s61, 0
      %s64 = sadd.s32 %s63, 1
      %s65 = scalar_select %p62, %s63, %s64
      %p68 = pneg %p62
      %p69 = scmp.eq.s32.totalorder %s18, 1
      %p70 = por %p68, %p69
      %p71 = scmp.ne.s32.totalorder %s63, %s66
      %p72 = scmp.eq.s32.totalorder %s18, 0
      %p73 = por %p71, %p72
      %p74 = scmp.ne.s32.totalorder %s63, %s66
      %p75 = scmp.eq.s32.totalorder %s23, 1
      %p76 = por %p74, %p75
      %p77 = scmp.ne.s32.totalorder %s66, %s67
      %p78 = scmp.eq.s32.totalorder %s23, 0
      %p79 = por %p77, %p78
      %p80 = scmp.ne.s32.totalorder %s66, %s67
      %p81 = scmp.eq.s32.totalorder %s24, 1
      %p82 = por %p80, %p81
      %p84 = scmp.ne.s32.totalorder %s67, %s83
      %p85 = scmp.eq.s32.totalorder %s24, 0
      %p86 = por %p84, %p85
      %s87 = ssub.s32 %s25, %s37
      %s88 = ssub.s32 %s26, %s33
      %s89 = sor.u32 %s87, %s88
      %p90 = scmp.eq.s32.totalorder %s89, 0
      %s92 = sadd.s32 %s91, 1
      %s93 = scalar_select %p90, %s91, %s92
      %p96 = pneg %p90
      %p97 = scmp.eq.s32.totalorder %s18, 1
      %p98 = por %p96, %p97
      %p99 = scmp.ne.s32.totalorder %s91, %s94
      %p100 = scmp.eq.s32.totalorder %s18, 0
      %p101 = por %p99, %p100
      %p102 = scmp.ne.s32.totalorder %s91, %s94
      %p103 = scmp.eq.s32.totalorder %s23, 1
      %p104 = por %p102, %p103
      %p105 = scmp.ne.s32.totalorder %s94, %s95
      %p106 = scmp.eq.s32.totalorder %s23, 0
      %p107 = por %p105, %p106
      %p108 = scmp.ne.s32.totalorder %s94, %s95
      %p109 = scmp.eq.s32.totalorder %s24, 1
      %p110 = por %p108, %p109
      %p112 = scmp.ne.s32.totalorder %s95, %s111
      %p113 = scmp.eq.s32.totalorder %s24, 0
      %p114 = por %p112, %p113
      %s115 = ssub.s32 %s25, %s37
      %p116 = scmp.eq.s32.totalorder %s115, 0
      %s118 = sadd.s32 %s117, 1
      %s119 = scalar_select %p116, %s117, %s118
      %p122 = pneg %p116
      %p123 = scmp.eq.s32.totalorder %s18, 1
      %p124 = por %p122, %p123
      %p125 = scmp.ne.s32.totalorder %s117, %s120
      %p126 = scmp.eq.s32.totalorder %s18, 0
      %p127 = por %p125, %p126
      %p128 = scmp.ne.s32.totalorder %s117, %s120
      %p129 = scmp.eq.s32.totalorder %s23, 1
      %p130 = por %p128, %p129
      %p131 = scmp.ne.s32.totalorder %s120, %s121
      %p132 = scmp.eq.s32.totalorder %s23, 0
      %p133 = por %p131, %p132
      %p134 = scmp.ne.s32.totalorder %s120, %s121
      %p135 = scmp.eq.s32.totalorder %s24, 1
      %p136 = por %p134, %p135
      %p138 = scmp.ne.s32.totalorder %s121, %s137
      %p139 = scmp.eq.s32.totalorder %s24, 0
      %p140 = por %p138, %p139
      %p141 = scmp.le.s32.totalorder 1, %s18
      %p142 = scmp.lt.s32.totalorder %s18, 3
      %p143 = pnand %p141, %p142
      %p144 = pneg %p143
      // Predicated region
      $region9: #{tpu_custom_call.1} parent=5 // pred_check
        _
      $region10: #{tpu_custom_call.1} parent=5 // pred_check_branch
        %146 = sbr.rel (%p143) target = $region12
      $region11: #{tpu_custom_call.1} parent=5 // pred_region
        %s147 = ssub.s32 %s18, 1
        // Predicated region
        $region13: #{tpu_custom_call.1} parent=11 // pred_check
          %p148 = pneg %p51
        $region14: #{tpu_custom_call.1} parent=11 // pred_check_branch
          %150 = sbr.rel (%p148) target = $region16
        $region15: #{tpu_custom_call.1} parent=11 // pred_region
          _
        $region16: #{tpu_custom_call.1} parent=11 // pred_fallthru
          _
      $region12: #{tpu_custom_call.1} parent=5 // pred_fallthru
        _
      %p151 = scmp.lt.s32.totalorder %s18, 2
      // Predicated region
      $region17: #{tpu_custom_call.1} parent=5 // pred_check
        %p152 = pneg %p151
      $region18: #{tpu_custom_call.1} parent=5 // pred_check_branch
        %154 = sbr.rel (%p152) target = $region20
      $region19: #{tpu_custom_call.1} parent=5 // pred_region
        // Predicated region
        $region21: #{tpu_custom_call.1} parent=19 // pred_check
          %p155 = pneg %p73
        $region22: #{tpu_custom_call.1} parent=19 // pred_check_branch
          %157 = sbr.rel (%p155) target = $region24
        $region23: #{tpu_custom_call.1} parent=19 // pred_region
          %s158 = sand.u32 %s63, 1
          %s159 = scalar_lea.sflag [#allocation3], %s158
          %s160 = sand.u32 %s63, 1
          %s161 = smul.addr %s160, 8
          %s162 = scalar_lea.vmem [#allocation2], %s161
          %s163 = smul.u32 2, %s26
          %s165 = ssub.s32 128, 128
          %166 = vsyncadd %s159, %s165
          %s167 = smul.addr %s25, 2
          %s168 = sadd.s32 %s163, %s167
          %s169 = smul.addr %s168, 64
          %s170 = scalar_lea.hbm %s1, %s169
          %s172 = sshll.u32 %s162, 4
          %s173 = int_to_ptr.vmem [resolvable:$true] %s172
          %175 = dma.hbm_to_vmem [thread:$0]  %s170, 128, %s173, %s159
        $region24: #{tpu_custom_call.1} parent=19 // pred_fallthru
          _
        // Predicated region
        $region25: #{tpu_custom_call.1} parent=19 // pred_check
          %p176 = pneg %p101
        $region26: #{tpu_custom_call.1} parent=19 // pred_check_branch
          %178 = sbr.rel (%p176) target = $region28
        $region27: #{tpu_custom_call.1} parent=19 // pred_region
          %s179 = sand.u32 %s91, 1
          %s180 = scalar_lea.sflag [#allocation6], %s179
          %s181 = sand.u32 %s91, 1
          %s182 = smul.addr %s181, 8
          %s183 = scalar_lea.vmem [#allocation5], %s182
          %s184 = smul.u32 2, %s26
          %s186 = ssub.s32 128, 128
          %187 = vsyncadd %s180, %s186
          %s188 = smul.addr %s25, 2
          %s189 = sadd.s32 %s184, %s188
          %s190 = smul.addr %s189, 64
          %s191 = scalar_lea.hbm %s2, %s190
          %s193 = sshll.u32 %s183, 4
          %s194 = int_to_ptr.vmem [resolvable:$true] %s193
          %196 = dma.hbm_to_vmem [thread:$0]  %s191, 128, %s194, %s180
        $region28: #{tpu_custom_call.1} parent=19 // pred_fallthru
          _
      $region20: #{tpu_custom_call.1} parent=5 // pred_fallthru
        _
      %p197 = scmp.le.s32.totalorder 1, %s18
      %p198 = scmp.lt.s32.totalorder %s18, 3
      %p199 = pnand %p197, %p198
      %p200 = pneg %p199
      // Predicated region
      $region29: #{tpu_custom_call.1} parent=5 // pred_check
        _
      $region30: #{tpu_custom_call.1} parent=5 // pred_check_branch
        %202 = sbr.rel (%p199) target = $region32
      $region31: #{tpu_custom_call.1} parent=5 // pred_region
        %s203 = ssub.s32 %s18, 1
        %s204 = sand.u32 %s66, 1
        %s205 = scalar_lea.sflag [#allocation3], %s204
        %s206 = sand.u32 %s66, 1
        %s207 = smul.addr %s206, 8
        %s208 = scalar_lea.vmem [#allocation2], %s207
        // Predicated region
        $region33: #{tpu_custom_call.1} parent=31 // pred_check
          %p209 = pneg %p79
        $region34: #{tpu_custom_call.1} parent=31 // pred_check_branch
          %211 = sbr.rel (%p209) target = $region36
        $region35: #{tpu_custom_call.1} parent=31 // pred_region
          %212 = dma.done %s205, 128
        $region36: #{tpu_custom_call.1} parent=31 // pred_fallthru
          _
        %s213 = sand.u32 %s94, 1
        %s214 = scalar_lea.sflag [#allocation6], %s213
        %s215 = sand.u32 %s94, 1
        %s216 = smul.addr %s215, 8
        %s217 = scalar_lea.vmem [#allocation5], %s216
        // Predicated region
        $region37: #{tpu_custom_call.1} parent=31 // pred_check
          %p218 = pneg %p107
        $region38: #{tpu_custom_call.1} parent=31 // pred_check_branch
          %220 = sbr.rel (%p218) target = $region40
        $region39: #{tpu_custom_call.1} parent=31 // pred_region
          %221 = dma.done %s214, 128
        $region40: #{tpu_custom_call.1} parent=31 // pred_fallthru
          _
        %p222 = pneg %p51
        %p223 = pneg %p48
        %s224 = sand.u32 %s66, 1
        %s225 = scalar_lea.sflag [#allocation3], %s224
        %s226 = sand.u32 %s66, 1
        %s227 = smul.addr %s226, 8
        %s228 = scalar_lea.vmem [#allocation2], %s227
        %p229 = pneg %p79
        %p230 = pneg %p76
        %s231 = sand.u32 %s94, 1
        %s232 = scalar_lea.sflag [#allocation6], %s231
        %s233 = sand.u32 %s94, 1
        %s234 = smul.addr %s233, 8
        %s235 = scalar_lea.vmem [#allocation5], %s234
        %p236 = pneg %p107
        %p237 = pneg %p104
        %p238 = pneg %p133
        %p239 = pneg %p130
        %s240 = sand.u32 %s120, 1
        %s241 = scalar_lea.sflag [#allocation4], %s240
        %s242 = sand.u32 %s120, 1
        %s243 = smul.addr %s242, 8
        %s244 = scalar_lea.vmem [#allocation7], %s243
        %s245 = smul.u32 2, %s28
        %s246 = smul.u32 2, %s28
        %p247 = scmp.eq.s32.totalorder %s28, 0
        // Predicated region
        $region41: #{tpu_custom_call.1} parent=31 // pred_check
          %p248 = pneg %p247
        $region42: #{tpu_custom_call.1} parent=31 // pred_check_branch
          %250 = sbr.rel (%p248) target = $region44
        $region43: #{tpu_custom_call.1} parent=31 // pred_region
          %251 = vst [vmem:[%s244] sm:$0xff] 0.0
        $region44: #{tpu_custom_call.1} parent=31 // pred_fallthru
          _
        %v252 = vld [vmem:[%s208] sm:$0xff]
        %v253 = vld [vmem:[%s217] sm:$0xff]
        %v254 = vld [vmem:[%s0] sm:$0xf]
        %v256 = vcombine.high %v252, %v252
        %vm258 = vcmask 1043456
        %v259 = vsel %vm258, %v252, -inf
        %v260 = vrot.slane %v259, 4
        %v261 = vmax.f32 %v259, %v260
        %v262 = vrot.slane %v261, 2
        %v263 = vmax.f32 %v261, %v262
        %v264 = vrot.slane %v263, 1
        %v265 = vmax.f32 %v263, %v264
        %v266 = vsel %vm258, %v256, -inf
        %v267 = vrot.slane %v266, 4
        %v268 = vmax.f32 %v266, %v267
        %v269 = vrot.slane %v268, 2
        %v270 = vmax.f32 %v268, %v269
        %v271 = vrot.slane %v270, 1
        %v272 = vmax.f32 %v270, %v271
        %v275 = vcombine.low %v265, %v272
        %v277 = vsub.f32 %v252, %v275
        %v278 = vmul.f32 %v277, 1.442695
        %v279 = vpow.pop %v278
        %v281 = vcombine.high %v279, %v279
        %v283 = vsel %vm258, %v279, 0.0
        %v284 = vrot.slane %v283, 4
        %v285 = vadd.f32 %v283, %v284
        %v286 = vrot.slane %v285, 2
        %v287 = vadd.f32 %v285, %v286
        %v288 = vrot.slane %v287, 1
        %v289 = vadd.f32 %v287, %v288
        %v290 = vsel %vm258, %v281, 0.0
        %v291 = vrot.slane %v290, 4
        %v292 = vadd.f32 %v290, %v291
        %v293 = vrot.slane %v292, 2
        %v294 = vadd.f32 %v292, %v293
        %v295 = vrot.slane %v294, 1
        %v296 = vadd.f32 %v294, %v295
        %v297 = vrcp.pop %v289
        %v298 = vrcp.pop %v296
        %v299 = vlog2.pop %v289
        %v300 = vmul.f32 %v299, 0.6931472
        %v301 = vlog2.pop %v296
        %v302 = vmul.f32 %v301, 0.6931472
        %v303 = vlaneseq
        %v304 = vshrl.u32 %v303, 7
        %v306 = vcombine.high %v253, %v253
        %v308 = vsel %vm258, %v253, -inf
        %v309 = vrot.slane %v308, 4
        %v310 = vmax.f32 %v308, %v309
        %v311 = vrot.slane %v310, 2
        %v312 = vmax.f32 %v310, %v311
        %v313 = vrot.slane %v312, 1
        %v314 = vmax.f32 %v312, %v313
        %v315 = vsel %vm258, %v306, -inf
        %v316 = vrot.slane %v315, 4
        %v317 = vmax.f32 %v315, %v316
        %v318 = vrot.slane %v317, 2
        %v319 = vmax.f32 %v317, %v318
        %v320 = vrot.slane %v319, 1
        %v321 = vmax.f32 %v319, %v320
        %v324 = vcombine.low %v314, %v321
        %vm326 = vcmp.eq.f32.partialorder %v253, %v324
        %v328 = vunpack.c.l.s4 839922192
        %v329 = vunpack.c.0.s8 %v328
        %v330 = vlaneseq
        %v331 = vshrl.u32 %v330, 7
        %v332 = vsub.s32 %v329, %v331
        %v333 = vrot.slane %v304, %v332
        %v334 = vsel %vm326, %v333, 4
        %v335 = vcombine.high %v334, %v334
        %v336 = vsel %vm258, %v334, 2147483647
        %v337 = vrot.slane %v336, 4
        %vm338 = vcmp.lt.s32.totalorder %v336, %v337
        %v339 = vsel %vm338, %v336, %v337
        %v340 = vrot.slane %v339, 2
        %vm341 = vcmp.lt.s32.totalorder %v339, %v340
        %v342 = vsel %vm341, %v339, %v340
        %v343 = vrot.slane %v342, 1
        %vm344 = vcmp.lt.s32.totalorder %v342, %v343
        %v345 = vsel %vm344, %v342, %v343
        %v346 = vsel %vm258, %v335, 2147483647
        %v347 = vrot.slane %v346, 4
        %vm348 = vcmp.lt.s32.totalorder %v346, %v347
        %v349 = vsel %vm348, %v346, %v347
        %v350 = vrot.slane %v349, 2
        %vm351 = vcmp.lt.s32.totalorder %v349, %v350
        %v352 = vsel %vm351, %v349, %v350
        %v353 = vrot.slane %v352, 1
        %vm354 = vcmp.lt.s32.totalorder %v352, %v353
        %v355 = vsel %vm354, %v352, %v353
        %vm356 = vcmp.eq.s32.totalorder %v304, %v345
        %vm357 = vcmp.eq.s32.totalorder %v304, %v355
        %v359 = vcombine.high %v277, %v277
        %v361 = vsel %vm356, %v277, 0.0
        %v362 = vsel %vm357, %v359, 0.0
        %v363 = vsel %vm258, %v361, 0.0
        %v364 = vrot.slane %v363, 4
        %v365 = vadd.f32 %v363, %v364
        %v366 = vrot.slane %v365, 2
        %v367 = vadd.f32 %v365, %v366
        %v368 = vrot.slane %v367, 1
        %v369 = vadd.f32 %v367, %v368
        %v370 = vsel %vm258, %v362, 0.0
        %v371 = vrot.slane %v370, 4
        %v372 = vadd.f32 %v370, %v371
        %v373 = vrot.slane %v372, 2
        %v374 = vadd.f32 %v372, %v373
        %v375 = vrot.slane %v374, 1
        %v376 = vadd.f32 %v374, %v375
        %378 = vset.pattern.permute.xlu0 0
        %379 = vperm.xlu0 %378, %v254
        %v380 = vpop.permute.xlu0 %379
        %v382 = vsel %vm356, %v380, 0.0
        %v383 = vsel %vm357, %v380, 0.0
        %v384 = vsel %vm258, %v382, 0.0
        %v385 = vrot.slane %v384, 4
        %v386 = vadd.f32 %v384, %v385
        %v387 = vrot.slane %v386, 2
        %v388 = vadd.f32 %v386, %v387
        %v389 = vrot.slane %v388, 1
        %v390 = vadd.f32 %v388, %v389
        %v391 = vsel %vm258, %v383, 0.0
        %v392 = vrot.slane %v391, 4
        %v393 = vadd.f32 %v391, %v392
        %v394 = vrot.slane %v393, 2
        %v395 = vadd.f32 %v393, %v394
        %v396 = vrot.slane %v395, 1
        %v397 = vadd.f32 %v395, %v396
        %v398 = vsub.f32 %v300, %v369
        %v399 = vsub.f32 %v302, %v376
        %v400 = vmul.f32 %v390, %v398
        %v401 = vmul.f32 %v397, %v399
        %v402 = vsub.f32 0.0, %v400
        %v403 = vsub.f32 0.0, %v401
        %v404 = vmul.f32 %v402, 1.442695
        %v405 = vpow.pop %v404
        %v406 = vmul.f32 %v403, 1.442695
        %v407 = vpow.pop %v406
        %v408 = vsub.f32 1.0, %v405
        %v409 = vsub.f32 1.0, %v407
        %v410 = vmul.f32 %v408, %v408
        %v411 = vmul.f32 %v409, %v409
        %v412 = vmul.f32 %v410, %v400
        %v413 = vmul.f32 %v411, %v401
        %v416 = vcombine.low %v297, %v298
        %v418 = vmul.f32 %v279, %v416
        %v419 = vsub.f32 1.0, %v418
        %v420 = vmul.f32 %v279, %v253
        %v422 = vcombine.high %v420, %v420
        %v424 = vsel %vm258, %v420, 0.0
        %v425 = vrot.slane %v424, 4
        %v426 = vadd.f32 %v424, %v425
        %v427 = vrot.slane %v426, 2
        %v428 = vadd.f32 %v426, %v427
        %v429 = vrot.slane %v428, 1
        %v430 = vadd.f32 %v428, %v429
        %v431 = vsel %vm258, %v422, 0.0
        %v432 = vrot.slane %v431, 4
        %v433 = vadd.f32 %v431, %v432
        %v434 = vrot.slane %v433, 2
        %v435 = vadd.f32 %v433, %v434
        %v436 = vrot.slane %v435, 1
        %v437 = vadd.f32 %v435, %v436
        %v438 = vlaneseq
        %v439 = vshrl.u32 %v438, 7
        %v440 = vsub.s32 0, %v439
        %v441 = vrot.slane %v420, %v440
        %v442 = vlaneseq
        %v443 = vshrl.u32 %v442, 7
        %v444 = vsub.s32 4, %v443
        %v445 = vrot.slane %v420, %v444
        %v448 = vsub.f32 %v430, %v441
        %v449 = vsub.f32 %v437, %v445
        %v450 = vmul.f32 %v448, %v297
        %v451 = vmul.f32 %v449, %v298
        %v452 = vsel %vm258, %v253, 0.0
        %v453 = vrot.slane %v452, 4
        %v454 = vadd.f32 %v452, %v453
        %v455 = vrot.slane %v454, 2
        %v456 = vadd.f32 %v454, %v455
        %v457 = vrot.slane %v456, 1
        %v458 = vadd.f32 %v456, %v457
        %v459 = vsel %vm258, %v306, 0.0
        %v460 = vrot.slane %v459, 4
        %v461 = vadd.f32 %v459, %v460
        %v462 = vrot.slane %v461, 2
        %v463 = vadd.f32 %v461, %v462
        %v464 = vrot.slane %v463, 1
        %v465 = vadd.f32 %v463, %v464
        %v466 = vlaneseq
        %v467 = vshrl.u32 %v466, 7
        %v468 = vsub.s32 0, %v467
        %v469 = vrot.slane %v253, %v468
        %v470 = vlaneseq
        %v471 = vshrl.u32 %v470, 7
        %v472 = vsub.s32 4, %v471
        %v473 = vrot.slane %v253, %v472
        %v476 = vsub.f32 %v458, %v469
        %v477 = vsub.f32 %v465, %v473
        %vm478 = vcmask 1040384
        %v479 = vsel %vm478, %v412, 0.0
        %v480 = vsel %vm478, %v413, 0.0
        %v481 = vadd.f32 %v479, %v480
        %482 = vadd.xlane.f32.xlu0 %v481
        %v483 = vpop.xlane.xlu0 %482
        %v484 = vrot.slane %v483, 4
        %v485 = vadd.f32 %v483, %v484
        %v486 = vrot.slane %v485, 2
        %v487 = vadd.f32 %v485, %v486
        %v488 = vrot.slane %v487, 1
        %v489 = vadd.f32 %v487, %v488
        %s490 = vtos %v489
        %v491 = vsel %vm478, %v450, 0.0
        %v492 = vsel %vm478, %v451, 0.0
        %v493 = vadd.f32 %v491, %v492
        %494 = vadd.xlane.f32.xlu0 %v493
        %v495 = vpop.xlane.xlu0 %494
        %v496 = vrot.slane %v495, 4
        %v497 = vadd.f32 %v495, %v496
        %v498 = vrot.slane %v497, 2
        %v499 = vadd.f32 %v497, %v498
        %v500 = vrot.slane %v499, 1
        %v501 = vadd.f32 %v499, %v500
        %s502 = vtos %v501
        %v504 = vlaneseq
        %v505 = vshrl.u32 %v504, 7
        %v506 = vsub.s32 0, %v505
        %v507 = vrot.slane %v419, %v506
        %v508 = vlaneseq
        %v509 = vshrl.u32 %v508, 7
        %v510 = vsub.s32 4, %v509
        %v511 = vrot.slane %v419, %v510
        %v514 = vsel %vm478, %v507, 0.0
        %v515 = vsel %vm478, %v511, 0.0
        %v516 = vadd.f32 %v514, %v515
        %517 = vadd.xlane.f32.xlu0 %v516
        %v518 = vpop.xlane.xlu0 %517
        %v519 = vrot.slane %v518, 4
        %v520 = vadd.f32 %v518, %v519
        %v521 = vrot.slane %v520, 2
        %v522 = vadd.f32 %v520, %v521
        %v523 = vrot.slane %v522, 1
        %v524 = vadd.f32 %v522, %v523
        %s525 = vtos %v524
        %v526 = vsel %vm478, %v476, 0.0
        %v527 = vsel %vm478, %v477, 0.0
        %v528 = vadd.f32 %v526, %v527
        %529 = vadd.xlane.f32.xlu0 %v528
        %v530 = vpop.xlane.xlu0 %529
        %v531 = vrot.slane %v530, 4
        %v532 = vadd.f32 %v530, %v531
        %v533 = vrot.slane %v532, 2
        %v534 = vadd.f32 %v532, %v533
        %v535 = vrot.slane %v534, 1
        %v536 = vadd.f32 %v534, %v535
        %s537 = vtos %v536
        %vm538 = vcmp.eq.s32.totalorder %v304, 0
        %vm539 = vcmp.eq.s32.totalorder %v304, 1
        %vm540 = vcmp.eq.s32.totalorder %v304, 2
        %vm541 = vcmp.eq.s32.totalorder %v304, 3
        %v542 = vstv %s537
        %v543 = vsel %vm541, %v542, 0.0
        %v544 = vstv %s525
        %v545 = vsel %vm540, %v544, %v543
        %v546 = vstv %s502
        %v547 = vsel %vm539, %v546, %v545
        %v548 = vstv %s490
        %v549 = vsel %vm538, %v548, %v547
        %v550 = vld [vmem:[%s244] sm:$0xff]
        %v551 = vadd.f32 %v550, %v549
        %552 = vst [vmem:[%s244] sm:$0xff] %v551
        %s553 = sand.u32 %s120, 1
        %s554 = scalar_lea.sflag [#allocation4], %s553
        %s555 = sand.u32 %s120, 1
        %s556 = smul.addr %s555, 8
        %s557 = scalar_lea.vmem [#allocation7], %s556
        // Predicated region
        $region45: #{tpu_custom_call.1} parent=31 // pred_check
          %p558 = pneg %p130
        $region46: #{tpu_custom_call.1} parent=31 // pred_check_branch
          %560 = sbr.rel (%p558) target = $region48
        $region47: #{tpu_custom_call.1} parent=31 // pred_region
          %s562 = ssub.s32 128, 128
          %563 = vsyncadd %s554, %s562
          %s564 = smul.addr %s27, 128
          %s565 = scalar_lea.hbm %s3, %s564
          %s567 = sshll.u32 %s557, 4
          %s568 = int_to_ptr.vmem [resolvable:$true] %s567
          %570 = dma.vmem_to_hbm [thread:$0]  %s568, 128, %s565, %s554
        $region48: #{tpu_custom_call.1} parent=31 // pred_fallthru
          _
      $region32: #{tpu_custom_call.1} parent=5 // pred_fallthru
        _
      %p571 = scmp.le.s32.totalorder 2, %s18
      // Predicated region
      $region49: #{tpu_custom_call.1} parent=5 // pred_check
        %p572 = pneg %p571
      $region50: #{tpu_custom_call.1} parent=5 // pred_check_branch
        %574 = sbr.rel (%p572) target = $region52
      $region51: #{tpu_custom_call.1} parent=5 // pred_region
        %s575 = ssub.s32 %s18, 2
        // Predicated region
        $region53: #{tpu_custom_call.1} parent=51 // pred_check
          %p576 = pneg %p136
        $region54: #{tpu_custom_call.1} parent=51 // pred_check_branch
          %578 = sbr.rel (%p576) target = $region56
        $region55: #{tpu_custom_call.1} parent=51 // pred_region
          %s579 = sand.u32 %s121, 1
          %s580 = scalar_lea.sflag [#allocation4], %s579
          %s581 = sand.u32 %s121, 1
          %s582 = smul.addr %s581, 8
          %s583 = scalar_lea.vmem [#allocation7], %s582
          %584 = dma.done %s580, 128
        $region56: #{tpu_custom_call.1} parent=51 // pred_fallthru
          _
      $region52: #{tpu_custom_call.1} parent=5 // pred_fallthru
        _
    $region6: #{tpu_custom_call.1} parent=1 // loop_footer
      %s22 = sadd.s32 1, %s18
    $region7: #{tpu_custom_call.1} parent=1 // loop_footer_branch
      %17 = sbr.rel target = $region3
    $region8: #{tpu_custom_call.1} parent=1 // loop_exit
      _
    %585 = vsyncpa [#allocation3], 1
    %s586 = scalar_lea.sflag [#allocation3], 1
    %587 = vsyncpa %s586, 1
    %588 = vsyncpa [#allocation6], 1
    %s589 = scalar_lea.sflag [#allocation6], 1
    %590 = vsyncpa %s589, 1
    %591 = vsyncpa [#allocation4], 1
    %s592 = scalar_lea.sflag [#allocation4], 1
    %593 = vsyncpa %s592, 1

</llo_original>
